<compile_context>
chip_gen: v7x
topology: tpu7x:2x2x1
jax: 0.10.0
libtpu: 0.0.40
codegen_flags: <defaults>
</compile_context>

<pallas_src>
import math
import functools

import jax
import jax.numpy as jnp
import numpy as np
from jax.experimental import pallas as pl
from jax.experimental.pallas import tpu as pltpu


def _round_up(v, m):
    return (v + m - 1) // m * m


def _choose_batch_tile(B, LP, DP, itemsize, *, target_rows=512,
                       x_block_budget=4 * 1024 * 1024):
    """Pick how many batch elements to fuse per grid step.

    Goal: flatten Bt*LP rows into the first GEMM so the MXU sees a large M,
    while (a) keeping the double-buffered x block well inside VMEM (budget
    sized conservatively for v7x's 64 MiB) and (b) preferring >= 2 grid
    steps so v7x's two TensorCores both get work.
    """
    divisors = [d for d in range(1, B + 1) if B % d == 0]
    ok = [d for d in divisors
          if d * LP <= max(target_rows, LP)
          and 2 * d * LP * DP * itemsize <= x_block_budget]
    if not ok:
        ok = [1]
    multi_step = [d for d in ok if B // d >= 2]
    return max(multi_step) if multi_step else max(ok)


def _vmem_limit_bytes(Bt, LP, DP, H, r, itemsize):
    """Explicit scoped-VMEM limit: double-buffered operands + f32 temps."""
    x_blk = Bt * LP * DP * itemsize
    mask_blk = Bt * LP * 4
    w1 = DP * H * itemsize
    w2 = r * H * itemsize
    out_blk = Bt * r * DP * 4
    att_blk = Bt * r * LP * 4
    inter = Bt * LP * H * 4 + 2 * Bt * r * LP * 4          # h + softmax temps
    est = 2 * (x_blk + mask_blk + w1 + w2 + out_blk + att_blk) + inter
    # Raise v5e's 16 MiB default scoped limit; stay under v7x's 64 MiB VMEM.
    return int(min(max(4 * est, 32 * 1024 * 1024), 60 * 1024 * 1024))


def _ssa_kernel(x_ref, mask_ref, w1t_ref, w2_ref, out_ref, att_ref, *, bt, lp):
    """One grid step over `bt` batch elements (all tiles already in VMEM).

    x_ref   : (bt, LP, DP)   compute dtype (f32 or bf16)
    mask_ref: (bt, 1, LP)    f32, 1 = valid
    w1t_ref : (DP, H)        compute dtype
    w2_ref  : (r, H)         compute dtype, already scaled by D**-0.5
    out_ref : (bt, r, DP)    f32
    att_ref : (bt, r, LP)    f32
    """
    compute_dtype = x_ref.dtype
    dp = x_ref.shape[-1]

    # One big MXU GEMM over the flattened (bt*LP, DP) block.
    xf = x_ref[...].reshape(bt * lp, dp)                               # (bt*LP, DP)
    h = jnp.tanh(jnp.dot(xf, w1t_ref[...],
                         preferred_element_type=jnp.float32))          # f32
    h = h.astype(compute_dtype)                                        # (bt*LP, H)
    w2 = w2_ref[...]                                                   # (r, H)

    for b in range(bt):                                                # small, static
        h_b = h[b * lp:(b + 1) * lp, :]                                # (LP, H)
        # Emit (r, LP) directly from the MXU (NT dot) -- no XLU transpose of a
        # lane-sparse (L, r) tile.
        s = jax.lax.dot_general(
            w2, h_b, dimension_numbers=(((1,), (1,)), ((), ())),
            preferred_element_type=jnp.float32)                        # (r, LP)

        # masked_fill_(mask == 0, -1e9); mask (1, LP) broadcasts over (r, LP).
        s = jnp.where(mask_ref[b] == 0.0, jnp.float32(-1000000000.0), s)

        # Softmax over the (padded) sequence axis; masked/padded slots -> 0.
        m = jnp.max(s, axis=-1, keepdims=True)
        e = jnp.exp(s - m)
        att = e * pl.reciprocal(jnp.sum(e, axis=-1, keepdims=True), approx=False)

        att_ref[b] = att.astype(att_ref.dtype)                         # (r, LP)
        out_ref[b] = jnp.dot(att.astype(compute_dtype), x_ref[b],
                             preferred_element_type=jnp.float32
                             ).astype(out_ref.dtype)                   # (r, DP)


def structured_self_attention(x, length_index, w1t, w2t, *, scaled_att=True,
                              penal_coeff=0.0, compute_dtype=jnp.float32):
    """Pallas forward of StructuredSelfAttention.

    x:            (B, L, in_dim) float32
    length_index: (B, L) mask (1 = valid, 0 = pad) or None
    w1t:          (in_dim, h_dim) == W1.T
    w2t:          (h_dim, r)      == W2.T
    compute_dtype: dtype fed to the MXU (jnp.float32 or jnp.bfloat16);
                   mask/softmax math is always f32.
    Returns (out, att, penal_term) matching the PyTorch module.
    """
    B, L, D = x.shape
    H = w1t.shape[1]
    r = w2t.shape[1]

    # Lane-dense padding: att stores (.., LP) and out stores (.., DP) become
    # unmasked vst; mask handles the L padding, D padding is sliced off.
    LP = _round_up(L, 128)
    DP = _round_up(D, 128)

    if length_index is None:
        mask = jnp.ones((B, L), dtype=jnp.float32)
    else:
        mask = length_index.astype(jnp.float32)
    mask_p = jnp.zeros((B, 1, LP), jnp.float32).at[:, 0, :L].set(mask)

    x_p = jnp.zeros((B, LP, DP), compute_dtype).at[:, :L, :D].set(
        x.astype(compute_dtype))
    w1t_p = jnp.zeros((DP, H), compute_dtype).at[:D, :].set(
        w1t.astype(compute_dtype))

    # Fold the 1/sqrt(D) attention scale into W2 on the host and store it as
    # (r, H) so the kernel's NT dot emits (r, L) directly.
    scale = (D ** (-0.5)) if scaled_att else 1.0
    w2_rh = (w2t.T * jnp.float32(scale)).astype(compute_dtype)

    itemsize = jnp.dtype(compute_dtype).itemsize
    Bt = _choose_batch_tile(B, LP, DP, itemsize)
    grid = (B // Bt,)
    vmem_limit = _vmem_limit_bytes(Bt, LP, DP, H, r, itemsize)

    kernel = functools.partial(_ssa_kernel, bt=Bt, lp=LP)

    out_p, att_p = pl.pallas_call(
        kernel,
        out_shape=(
            jax.ShapeDtypeStruct((B, r, DP), jnp.float32),
            jax.ShapeDtypeStruct((B, r, LP), jnp.float32),
        ),
        grid_spec=pltpu.PrefetchScalarGridSpec(
            num_scalar_prefetch=0,
            grid=grid,
            in_specs=[
                pl.BlockSpec((Bt, LP, DP), lambda i: (i, 0, 0)),  # x (padded)
                pl.BlockSpec((Bt, 1, LP), lambda i: (i, 0, 0)),   # mask
                pl.BlockSpec((DP, H), lambda i: (0, 0)),          # W1^T (resident)
                pl.BlockSpec((r, H), lambda i: (0, 0)),           # W2*scale (resident)
            ],
            out_specs=[
                pl.BlockSpec((Bt, r, DP), lambda i: (i, 0, 0)),   # att @ x
                pl.BlockSpec((Bt, r, LP), lambda i: (i, 0, 0)),   # att
            ],
        ),
        compiler_params=pltpu.CompilerParams(
            dimension_semantics=("parallel",),
            vmem_limit_bytes=vmem_limit),
    )(x_p, mask_p, w1t_p, w2_rh)

    out = out_p[:, :, :D]
    att = att_p[:, :, :L]

    penal_term = None
    if penal_coeff > 0.0:
        # P = mean_b || att @ att^T - I ||_F * penal_coeff   (plain-JAX glue)
        # TODO(synk): emit the (r, r) Gram as a third kernel output while att
        # is still in VMEM to avoid re-reading (B, r, L) att from HBM.
        eye = jnp.eye(r, dtype=jnp.float32)
        gram = jnp.einsum("brl,bsl->brs", att, att) - eye[None]
        penal_term = jnp.mean(jnp.sqrt(jnp.sum(gram * gram, axis=(1, 2)))) * penal_coeff

    return out, att, penal_term


def _xavier_uniform(key, fan_out, fan_in):
    # torch.nn.init.xavier_uniform_ on a (fan_out, fan_in) Linear weight
    bound = math.sqrt(6.0 / (fan_in + fan_out))
    return jax.random.uniform(key, (fan_out, fan_in), jnp.float32, -bound, bound)


def _reference(x, length_index, w1t, w2t, scaled_att=True):
    # Pure-JAX reference mirroring the PyTorch forward (f32 everywhere).
    s = jnp.tanh(x @ w1t) @ w2t                       # (B, L, r)
    s = jnp.swapaxes(s, -2, -1)                       # (B, r, L)
    if scaled_att:
        s = s * (x.shape[-1] ** (-0.5))
    if length_index is not None:
        mask = length_index[:, None, :]               # (B, 1, L)
        s = jnp.where(mask == 0, -1000000000.0, s)
    att = jax.nn.softmax(s, axis=-1)
    return att @ x, att


if __name__ == "__main__":
    # Small shapes consistent with the module: batch=2, seq=8, in_dim=32,
    # h_dim=16, r=4 attention heads.
    B, L, D, H, R = 2, 8, 32, 16, 4

    key = jax.random.PRNGKey(0)
    kx, k1, k2 = jax.random.split(key, 3)

    x = jax.random.normal(kx, (B, L, D), dtype=jnp.float32)

    # Deterministic Xavier-uniform init (shapes from the module's __init__).
    w1 = _xavier_uniform(k1, H, D)     # nn.Linear(in_dim, h_dim).weight -> (H, D)
    w2 = _xavier_uniform(k2, R, H)     # nn.Linear(h_dim, r).weight      -> (R, H)
    w1t, w2t = w1.T, w2.T

    # length_index mask: sequences of length 8 and 5.
    length_index = jnp.array(
        [[1] * 8,
         [1] * 5 + [0] * 3], dtype=jnp.int32)

    ref_out, ref_att = _reference(x, length_index, w1t, w2t, scaled_att=True)

    # --- f32 MXU path: tight check against the plain-JAX/PyTorch-equivalent ref.
    out32, att32, penal = structured_self_attention(
        x, length_index, w1t, w2t, scaled_att=True, penal_coeff=0.0,
        compute_dtype=jnp.float32)
    out32 = jax.block_until_ready(out32)
    att32 = jax.block_until_ready(att32)
    np.testing.assert_allclose(np.asarray(att32), np.asarray(ref_att),
                               rtol=1e-4, atol=1e-4)
    np.testing.assert_allclose(np.asarray(out32), np.asarray(ref_out),
                               rtol=1e-4, atol=1e-4)
    assert penal is None  # penal_coeff == 0.0 -> None, as in the PyTorch module

    # --- bf16 MXU path: looser check (bf16 operand rounding, f32 accumulate).
    out16, att16, _ = structured_self_attention(
        x, length_index, w1t, w2t, scaled_att=True, penal_coeff=0.0,
        compute_dtype=jnp.bfloat16)
    out16 = jax.block_until_ready(out16)
    att16 = jax.block_until_ready(att16)
    np.testing.assert_allclose(np.asarray(att16), np.asarray(ref_att),
                               rtol=2e-2, atol=2e-2)
    np.testing.assert_allclose(np.asarray(out16), np.asarray(ref_out),
                               rtol=2e-2, atol=2e-2)

    # --- penalty-term glue (penal_coeff > 0), f32 path.
    _, _, penal_on = structured_self_attention(
        x, length_index, w1t, w2t, scaled_att=True, penal_coeff=0.5,
        compute_dtype=jnp.float32)
    penal_on = jax.block_until_ready(penal_on)
    eye = jnp.eye(R, dtype=jnp.float32)
    ref_gram = jnp.einsum("brl,bsl->brs", ref_att, ref_att) - eye[None]
    ref_penal = jnp.mean(jnp.sqrt(jnp.sum(ref_gram * ref_gram, axis=(1, 2)))) * 0.5
    np.testing.assert_allclose(np.asarray(penal_on), np.asarray(ref_penal),
                               rtol=1e-3, atol=1e-3)

    print("KERNEL_OK")
</pallas_src>

<mosaic_0001>
module attributes {stable_mosaic.version = 11 : i64} {
  func.func @_ssa_kernel(%arg0: i32, %arg1: memref<1x128x128xf32, #tpu.memory_space<vmem>>, %arg2: memref<1x1x128xf32, #tpu.memory_space<vmem>>, %arg3: memref<128x16xf32, #tpu.memory_space<vmem>>, %arg4: memref<4x16xf32, #tpu.memory_space<vmem>>, %arg5: memref<1x4x128xf32, #tpu.memory_space<vmem>>, %arg6: memref<1x4x128xf32, #tpu.memory_space<vmem>>) attributes {dimension_semantics = [#tpu.dimension_semantics<parallel>], iteration_bounds = array<i64: 2>, scalar_prefetch = 0 : i64, scratch_operands = 0 : i64, tpu.core_type = #tpu.core_type<tc>, window_params = [{transform_indices = @transform_0, window_bounds = array<i64: 1, 128, 128>}, {transform_indices = @transform_1, window_bounds = array<i64: 1, 1, 128>}, {pipeline_mode = #tpu.pipeline_mode<synchronous>, transform_indices = @transform_2, window_bounds = array<i64: 128, 16>}, {pipeline_mode = #tpu.pipeline_mode<synchronous>, transform_indices = @transform_3, window_bounds = array<i64: 4, 16>}, {transform_indices = @transform_4, window_bounds = array<i64: 1, 4, 128>}, {transform_indices = @transform_5, window_bounds = array<i64: 1, 4, 128>}]} {
    %c0 = arith.constant 0 : index
    %c0_0 = arith.constant 0 : index
    %c0_1 = arith.constant 0 : index
    %0 = vector.load %arg1[%c0, %c0_0, %c0_1] : memref<1x128x128xf32, #tpu.memory_space<vmem>>, vector<1x128x128xf32>
    %1 = vector.shape_cast %0 : vector<1x128x128xf32> to vector<128x128xf32>
    %c0_2 = arith.constant 0 : index
    %c0_3 = arith.constant 0 : index
    %2 = vector.load %arg3[%c0_2, %c0_3] : memref<128x16xf32, #tpu.memory_space<vmem>>, vector<128x16xf32>
    %cst = arith.constant dense<0.000000e+00> : vector<128x16xf32>
    %3 = tpu.matmul %1, %2, %cst {dimension_numbers = #tpu.dot_dimension_numbers<[1], [0], [0], [1], [0, 0, 1, 1], [], []>} : vector<128x128xf32>, vector<128x16xf32>, vector<128x16xf32> -> vector<128x16xf32>
    %4 = math.tanh %3 : vector<128x16xf32>
    %c0_4 = arith.constant 0 : index
    %c0_5 = arith.constant 0 : index
    %5 = vector.load %arg4[%c0_4, %c0_5] : memref<4x16xf32, #tpu.memory_space<vmem>>, vector<4x16xf32>
    %cst_6 = arith.constant dense<0.000000e+00> : vector<4x128xf32>
    %6 = tpu.matmul %5, %4, %cst_6 {dimension_numbers = #tpu.dot_dimension_numbers<[1], [1], [0], [0], [0, 0, 1, 0], [], []>} : vector<4x16xf32>, vector<128x16xf32>, vector<4x128xf32> -> vector<4x128xf32>
    %c0_7 = arith.constant 0 : index
    %c0_8 = arith.constant 0 : index
    %c0_9 = arith.constant 0 : index
    %7 = vector.load %arg2[%c0_7, %c0_8, %c0_9] : memref<1x1x128xf32, #tpu.memory_space<vmem>>, vector<1x1x128xf32>
    %8 = vector.shape_cast %7 : vector<1x1x128xf32> to vector<1x128xf32>
    %cst_10 = arith.constant 0.000000e+00 : f32
    %9 = vector.broadcast %cst_10 : f32 to vector<1x128xf32>
    %10 = arith.cmpf oeq, %8, %9 : vector<1x128xf32>
    %cst_11 = arith.constant -1.000000e+09 : f32
    %11 = vector.shape_cast %10 : vector<1x128xi1> to vector<1x128xi1>
    %12 = vector.broadcast %11 : vector<1x128xi1> to vector<4x128xi1>
    %13 = vector.broadcast %cst_11 : f32 to vector<4x128xf32>
    %14 = arith.select %12, %13, %6 : vector<4x128xi1>, vector<4x128xf32>
    %cst_12 = arith.constant dense<0xFF800000> : vector<4xf32>
    %15 = vector.multi_reduction <maximumf>, %14, %cst_12 [1] : vector<4x128xf32> to vector<4xf32>
    %16 = vector.shape_cast %15 : vector<4xf32> to vector<4x1xf32>
    %17 = vector.broadcast %16 : vector<4x1xf32> to vector<4x128xf32>
    %18 = arith.subf %14, %17 : vector<4x128xf32>
    %19 = math.exp %18 : vector<4x128xf32>
    %cst_13 = arith.constant dense<0.000000e+00> : vector<4xf32>
    %20 = vector.multi_reduction <add>, %19, %cst_13 [1] : vector<4x128xf32> to vector<4xf32>
    %21 = vector.shape_cast %20 : vector<4xf32> to vector<4x1xf32>
    %22 = tpu.reciprocal %21 : vector<4x1xf32> -> vector<4x1xf32>
    %23 = vector.broadcast %22 : vector<4x1xf32> to vector<4x128xf32>
    %24 = arith.mulf %19, %23 : vector<4x128xf32>
    %c0_14 = arith.constant 0 : index
    %c0_15 = arith.constant 0 : index
    %c0_16 = arith.constant 0 : index
    %25 = vector.load %arg6[%c0_14, %c0_15, %c0_16] : memref<1x4x128xf32, #tpu.memory_space<vmem>>, vector<1x4x128xf32>
    %26 = vector.shape_cast %25 : vector<1x4x128xf32> to vector<4x128xf32>
    %27 = vector.shape_cast %24 : vector<4x128xf32> to vector<1x4x128xf32>
    tpu.vector_store %arg6[%c0_14, %c0_15, %c0_16], %27 {strides = array<i32>} : memref<1x4x128xf32, #tpu.memory_space<vmem>>, vector<1x4x128xf32>,
    %c0_17 = arith.constant 0 : index
    %c0_18 = arith.constant 0 : index
    %c0_19 = arith.constant 0 : index
    %28 = vector.load %arg1[%c0_17, %c0_18, %c0_19] : memref<1x128x128xf32, #tpu.memory_space<vmem>>, vector<1x128x128xf32>
    %29 = vector.shape_cast %28 : vector<1x128x128xf32> to vector<128x128xf32>
    %cst_20 = arith.constant dense<0.000000e+00> : vector<4x128xf32>
    %30 = tpu.matmul %24, %29, %cst_20 {dimension_numbers = #tpu.dot_dimension_numbers<[1], [0], [0], [1], [0, 0, 1, 1], [], []>} : vector<4x128xf32>, vector<128x128xf32>, vector<4x128xf32> -> vector<4x128xf32>
    %c0_21 = arith.constant 0 : index
    %c0_22 = arith.constant 0 : index
    %c0_23 = arith.constant 0 : index
    %31 = vector.load %arg5[%c0_21, %c0_22, %c0_23] : memref<1x4x128xf32, #tpu.memory_space<vmem>>, vector<1x4x128xf32>
    %32 = vector.shape_cast %31 : vector<1x4x128xf32> to vector<4x128xf32>
    %33 = vector.shape_cast %30 : vector<4x128xf32> to vector<1x4x128xf32>
    tpu.vector_store %arg5[%c0_21, %c0_22, %c0_23], %33 {strides = array<i32>} : memref<1x4x128xf32, #tpu.memory_space<vmem>>, vector<1x4x128xf32>,
    return
  }
  func.func @transform_0(%arg0: i32) -> (i32, i32, i32) {
    %c0_i32 = arith.constant 0 : i32
    %c0_i32_0 = arith.constant 0 : i32
    %c0_i32_1 = arith.constant 0 : i32
    return %arg0, %c0_i32, %c0_i32_0 : i32, i32, i32
  }
  func.func @transform_1(%arg0: i32) -> (i32, i32, i32) {
    %c0_i32 = arith.constant 0 : i32
    %c0_i32_0 = arith.constant 0 : i32
    %c0_i32_1 = arith.constant 0 : i32
    return %arg0, %c0_i32, %c0_i32_0 : i32, i32, i32
  }
  func.func @transform_2(%arg0: i32) -> (i32, i32) {
    %c0_i32 = arith.constant 0 : i32
    %c0_i32_0 = arith.constant 0 : i32
    %c0_i32_1 = arith.constant 0 : i32
    return %c0_i32, %c0_i32_0 : i32, i32
  }
  func.func @transform_3(%arg0: i32) -> (i32, i32) {
    %c0_i32 = arith.constant 0 : i32
    %c0_i32_0 = arith.constant 0 : i32
    %c0_i32_1 = arith.constant 0 : i32
    return %c0_i32, %c0_i32_0 : i32, i32
  }
  func.func @transform_4(%arg0: i32) -> (i32, i32, i32) {
    %c0_i32 = arith.constant 0 : i32
    %c0_i32_0 = arith.constant 0 : i32
    %c0_i32_1 = arith.constant 0 : i32
    return %arg0, %c0_i32, %c0_i32_0 : i32, i32, i32
  }
  func.func @transform_5(%arg0: i32) -> (i32, i32, i32) {
    %c0_i32 = arith.constant 0 : i32
    %c0_i32_0 = arith.constant 0 : i32
    %c0_i32_1 = arith.constant 0 : i32
    return %arg0, %c0_i32, %c0_i32_0 : i32, i32, i32
  }
}

</mosaic_0001>

<llo_original>
// kernel: tpu_custom_call.1
$region0: #{tpu_custom_call.1}
  #allocation0 [shape = 'u32[]', space=smem, size = 0x4, offset = 0x4, fixed_abs, tag = 'smem constant byte address 0x4 - core index']
  #allocation1 [shape = 'u32[144,128]{1,0:T(1,128)}', space=vmem, size = 0x12000, scoped, tag = 'internal scratch']
  %s0 = inlined_call_operand.hbm [shape: f32[2,128,128], index: 0, kind: input, shape index: {}]
  %s1 = inlined_call_operand.vmem [shape: f32[2,1,128], index: 1, kind: input, shape index: {}]
  %s2 = inlined_call_operand.vmem [shape: f32[128,16], index: 2, kind: input, shape index: {}]
  %s3 = inlined_call_operand.vmem [shape: f32[4,16], index: 3, kind: input, shape index: {}]
  %s4 = inlined_call_operand.hbm [shape: f32[2,4,128], index: 4, kind: output, shape index: {0}]
  %s5 = inlined_call_operand.hbm [shape: f32[2,4,128], index: 5, kind: output, shape index: {1}]
  %6 = xla_tuple %s4, %s5
  %s7 = sld [smem:[#allocation0]]
  $region61: #{tpu_custom_call.1} parent=0
    _
  %s9 = ssub.s32 1, %s7
  %s10 = scalar_select 0, %s9, %s7
  $region1: #{tpu_custom_call.1} parent=0
    #allocation2 [shape = 'u8[131072]{0}', space=vmem, size = 0x20000, scoped, tag = 'input window, operand 0']
    #allocation3 [shape = 's32[2]{0}', space=sflag, size = 0x8, scoped, tag = 'scoped memory for tpu_custom_call.1']
    #allocation4 [shape = 's32[2]{0}', space=sflag, size = 0x8, scoped, tag = 'scoped memory for tpu_custom_call.1']
    #allocation5 [shape = 'u8[4096]{0}', space=vmem, size = 0x1000, scoped, tag = 'output window, operand 0']
    #allocation6 [shape = 'u8[4096]{0}', space=vmem, size = 0x1000, scoped, tag = 'output window, operand 1']
    #allocation7 [shape = 's32[2]{0}', space=sflag, size = 0x8, scoped, tag = 'scoped memory for tpu_custom_call.1']
    %11 = vsyncpa [#allocation3], 0
    %s12 = scalar_lea.sflag [#allocation3], 1
    %13 = vsyncpa %s12, 0
    %14 = vsyncpa [#allocation4], 0
    %s15 = scalar_lea.sflag [#allocation4], 1
    %16 = vsyncpa %s15, 0
    %17 = vsyncpa [#allocation7], 0
    %s18 = scalar_lea.sflag [#allocation7], 1
    %19 = vsyncpa %s18, 0
    loop: start=0, step=1, limit=4
    $region2: #{tpu_custom_call.1} parent=1 // loop_pre_header
      _
    $region3: #{tpu_custom_call.1} parent=1 // loop_header
      %s21 = sphi 0, %s25
      %p22 = scmp.ge.s32.totalorder %s21, 4
      %s31 = sphi 0, %s33
      %s34 = sphi 0, %s31
      %s35 = sphi 0, %s34
      %s51 = sphi 0, %s35
      %s57 = sphi 0, %s59
      %s60 = sphi 0, %s57
      %s61 = sphi 0, %s60
      %s77 = sphi 0, %s61
      %s81 = sphi 0, %s81
      %s83 = sphi 0, %s81
      %s84 = sphi 0, %s83
      %s98 = sphi 0, %s84
      %s102 = sphi 0, %s102
      %s104 = sphi 0, %s102
      %s105 = sphi 0, %s104
      %s119 = sphi 0, %s105
      %s125 = sphi 0, %s127
      %s128 = sphi 0, %s125
      %s129 = sphi 0, %s128
      %s145 = sphi 0, %s129
      %s151 = sphi 0, %s153
      %s154 = sphi 0, %s151
      %s155 = sphi 0, %s154
      %s171 = sphi 0, %s155
    $region4: #{tpu_custom_call.1} parent=1 // loop_header_branch
      %24 = sbr.rel (%p22) target = $region8
    $region5: #{tpu_custom_call.1} parent=1 // loop_body
      %s26 = ssub.s32 %s21, 1
      %s27 = ssub.s32 %s21, 2
      %s28 = sadd.s32 %s21, 1
      %s29 = ssub.s32 %s21, %s28
      %p30 = scmp.eq.s32.totalorder %s29, 0
      %s32 = sadd.s32 %s31, 1
      %s33 = scalar_select %p30, %s31, %s32
      %p36 = pneg %p30
      %p37 = scmp.eq.s32.totalorder %s21, 1
      %p38 = por %p36, %p37
      %p39 = scmp.ne.s32.totalorder %s31, %s34
      %p40 = scmp.eq.s32.totalorder %s21, 0
      %p41 = por %p39, %p40
      %p42 = scmp.ne.s32.totalorder %s31, %s34
      %p43 = scmp.eq.s32.totalorder %s26, 1
      %p44 = por %p42, %p43
      %p45 = scmp.ne.s32.totalorder %s34, %s35
      %p46 = scmp.eq.s32.totalorder %s26, 0
      %p47 = por %p45, %p46
      %p48 = scmp.ne.s32.totalorder %s34, %s35
      %p49 = scmp.eq.s32.totalorder %s27, 1
      %p50 = por %p48, %p49
      %p52 = scmp.ne.s32.totalorder %s35, %s51
      %p53 = scmp.eq.s32.totalorder %s27, 0
      %p54 = por %p52, %p53
      %s55 = ssub.s32 %s21, %s28
      %p56 = scmp.eq.s32.totalorder %s55, 0
      %s58 = sadd.s32 %s57, 1
      %s59 = scalar_select %p56, %s57, %s58
      %p62 = pneg %p56
      %p63 = scmp.eq.s32.totalorder %s21, 1
      %p64 = por %p62, %p63
      %p65 = scmp.ne.s32.totalorder %s57, %s60
      %p66 = scmp.eq.s32.totalorder %s21, 0
      %p67 = por %p65, %p66
      %p68 = scmp.ne.s32.totalorder %s57, %s60
      %p69 = scmp.eq.s32.totalorder %s26, 1
      %p70 = por %p68, %p69
      %p71 = scmp.ne.s32.totalorder %s60, %s61
      %p72 = scmp.eq.s32.totalorder %s26, 0
      %p73 = por %p71, %p72
      %p74 = scmp.ne.s32.totalorder %s60, %s61
      %p75 = scmp.eq.s32.totalorder %s27, 1
      %p76 = por %p74, %p75
      %p78 = scmp.ne.s32.totalorder %s61, %s77
      %p79 = scmp.eq.s32.totalorder %s27, 0
      %p80 = por %p78, %p79
      %s82 = sadd.s32 %s81, 1
      %p85 = scmp.eq.s32.totalorder %s21, 1
      %p86 = scmp.ne.s32.totalorder %s81, %s83
      %p87 = scmp.eq.s32.totalorder %s21, 0
      %p88 = por %p86, %p87
      %p89 = scmp.ne.s32.totalorder %s81, %s83
      %p90 = scmp.eq.s32.totalorder %s26, 1
      %p91 = por %p89, %p90
      %p92 = scmp.ne.s32.totalorder %s83, %s84
      %p93 = scmp.eq.s32.totalorder %s26, 0
      %p94 = por %p92, %p93
      %p95 = scmp.ne.s32.totalorder %s83, %s84
      %p96 = scmp.eq.s32.totalorder %s27, 1
      %p97 = por %p95, %p96
      %p99 = scmp.ne.s32.totalorder %s84, %s98
      %p100 = scmp.eq.s32.totalorder %s27, 0
      %p101 = por %p99, %p100
      %s103 = sadd.s32 %s102, 1
      %p106 = scmp.eq.s32.totalorder %s21, 1
      %p107 = scmp.ne.s32.totalorder %s102, %s104
      %p108 = scmp.eq.s32.totalorder %s21, 0
      %p109 = por %p107, %p108
      %p110 = scmp.ne.s32.totalorder %s102, %s104
      %p111 = scmp.eq.s32.totalorder %s26, 1
      %p112 = por %p110, %p111
      %p113 = scmp.ne.s32.totalorder %s104, %s105
      %p114 = scmp.eq.s32.totalorder %s26, 0
      %p115 = por %p113, %p114
      %p116 = scmp.ne.s32.totalorder %s104, %s105
      %p117 = scmp.eq.s32.totalorder %s27, 1
      %p118 = por %p116, %p117
      %p120 = scmp.ne.s32.totalorder %s105, %s119
      %p121 = scmp.eq.s32.totalorder %s27, 0
      %p122 = por %p120, %p121
      %s123 = ssub.s32 %s21, %s28
      %p124 = scmp.eq.s32.totalorder %s123, 0
      %s126 = sadd.s32 %s125, 1
      %s127 = scalar_select %p124, %s125, %s126
      %p130 = pneg %p124
      %p131 = scmp.eq.s32.totalorder %s21, 1
      %p132 = por %p130, %p131
      %p133 = scmp.ne.s32.totalorder %s125, %s128
      %p134 = scmp.eq.s32.totalorder %s21, 0
      %p135 = por %p133, %p134
      %p136 = scmp.ne.s32.totalorder %s125, %s128
      %p137 = scmp.eq.s32.totalorder %s26, 1
      %p138 = por %p136, %p137
      %p139 = scmp.ne.s32.totalorder %s128, %s129
      %p140 = scmp.eq.s32.totalorder %s26, 0
      %p141 = por %p139, %p140
      %p142 = scmp.ne.s32.totalorder %s128, %s129
      %p143 = scmp.eq.s32.totalorder %s27, 1
      %p144 = por %p142, %p143
      %p146 = scmp.ne.s32.totalorder %s129, %s145
      %p147 = scmp.eq.s32.totalorder %s27, 0
      %p148 = por %p146, %p147
      %s149 = ssub.s32 %s21, %s28
      %p150 = scmp.eq.s32.totalorder %s149, 0
      %s152 = sadd.s32 %s151, 1
      %s153 = scalar_select %p150, %s151, %s152
      %p156 = pneg %p150
      %p157 = scmp.eq.s32.totalorder %s21, 1
      %p158 = por %p156, %p157
      %p159 = scmp.ne.s32.totalorder %s151, %s154
      %p160 = scmp.eq.s32.totalorder %s21, 0
      %p161 = por %p159, %p160
      %p162 = scmp.ne.s32.totalorder %s151, %s154
      %p163 = scmp.eq.s32.totalorder %s26, 1
      %p164 = por %p162, %p163
      %p165 = scmp.ne.s32.totalorder %s154, %s155
      %p166 = scmp.eq.s32.totalorder %s26, 0
      %p167 = por %p165, %p166
      %p168 = scmp.ne.s32.totalorder %s154, %s155
      %p169 = scmp.eq.s32.totalorder %s27, 1
      %p170 = por %p168, %p169
      %p172 = scmp.ne.s32.totalorder %s155, %s171
      %p173 = scmp.eq.s32.totalorder %s27, 0
      %p174 = por %p172, %p173
      %p175 = scmp.le.s32.totalorder 1, %s21
      %p176 = scmp.lt.s32.totalorder %s21, 3
      %p177 = pnand %p175, %p176
      %p178 = pneg %p177
      // Predicated region
      $region9: #{tpu_custom_call.1} parent=5 // pred_check
        _
      $region10: #{tpu_custom_call.1} parent=5 // pred_check_branch
        %180 = sbr.rel (%p177) target = $region12
      $region11: #{tpu_custom_call.1} parent=5 // pred_region
        %s181 = ssub.s32 %s21, 1
        // Predicated region
        $region13: #{tpu_custom_call.1} parent=11 // pred_check
          %p182 = pneg %p94
        $region14: #{tpu_custom_call.1} parent=11 // pred_check_branch
          %184 = sbr.rel (%p182) target = $region16
        $region15: #{tpu_custom_call.1} parent=11 // pred_region
          _
        $region16: #{tpu_custom_call.1} parent=11 // pred_fallthru
          _
        // Predicated region
        $region17: #{tpu_custom_call.1} parent=11 // pred_check
          %p185 = pneg %p115
        $region18: #{tpu_custom_call.1} parent=11 // pred_check_branch
          %187 = sbr.rel (%p185) target = $region20
        $region19: #{tpu_custom_call.1} parent=11 // pred_region
          _
        $region20: #{tpu_custom_call.1} parent=11 // pred_fallthru
          _
      $region12: #{tpu_custom_call.1} parent=5 // pred_fallthru
        _
      %p188 = scmp.lt.s32.totalorder %s21, 2
      // Predicated region
      $region21: #{tpu_custom_call.1} parent=5 // pred_check
        %p189 = pneg %p188
      $region22: #{tpu_custom_call.1} parent=5 // pred_check_branch
        %191 = sbr.rel (%p189) target = $region24
      $region23: #{tpu_custom_call.1} parent=5 // pred_region
        // Predicated region
        $region25: #{tpu_custom_call.1} parent=23 // pred_check
          %p192 = pneg %p41
        $region26: #{tpu_custom_call.1} parent=23 // pred_check_branch
          %194 = sbr.rel (%p192) target = $region28
        $region27: #{tpu_custom_call.1} parent=23 // pred_region
          %s195 = sand.u32 %s31, 1
          %s196 = scalar_lea.sflag [#allocation3], %s195
          %s197 = sand.u32 %s31, 1
          %s198 = smul.addr %s197, 128
          %s199 = scalar_lea.vmem [#allocation2], %s198
          %s201 = ssub.s32 2048, 2048
          %202 = vsyncadd %s196, %s201
          %s203 = smul.addr %s21, 16
          %s204 = smul.addr %s203, 128
          %s205 = scalar_lea.hbm %s0, %s204
          %s206 = sshll.u32 %s199, 4
          %s207 = int_to_ptr.vmem [resolvable:$true] %s206
          %212 = dma.hbm_to_vmem [thread:$0]  %s205, 2048, %s207, %s196, 128, 128, 8
        $region28: #{tpu_custom_call.1} parent=23 // pred_fallthru
          _
        // Predicated region
        $region29: #{tpu_custom_call.1} parent=23 // pred_check
          %p213 = pneg %p67
        $region30: #{tpu_custom_call.1} parent=23 // pred_check_branch
          %215 = sbr.rel (%p213) target = $region32
        $region31: #{tpu_custom_call.1} parent=23 // pred_region
          %p216 = scmp.lt.s32.totalorder %s21, 1
          %s217 = scalar_select %p216, %s21, 1
          %s218 = scalar_lea.vmem %s1, %s217
        $region32: #{tpu_custom_call.1} parent=23 // pred_fallthru
          _
      $region24: #{tpu_custom_call.1} parent=5 // pred_fallthru
        _
      %p219 = scmp.le.s32.totalorder 1, %s21
      %p220 = scmp.lt.s32.totalorder %s21, 3
      %p221 = pnand %p219, %p220
      %p222 = pneg %p221
      // Predicated region
      $region33: #{tpu_custom_call.1} parent=5 // pred_check
        _
      $region34: #{tpu_custom_call.1} parent=5 // pred_check_branch
        %224 = sbr.rel (%p221) target = $region36
      $region35: #{tpu_custom_call.1} parent=5 // pred_region
        %s225 = ssub.s32 %s21, 1
        %s226 = sand.u32 %s34, 1
        %s227 = scalar_lea.sflag [#allocation3], %s226
        %s228 = sand.u32 %s34, 1
        %s229 = smul.addr %s228, 128
        %s230 = scalar_lea.vmem [#allocation2], %s229
        // Predicated region
        $region37: #{tpu_custom_call.1} parent=35 // pred_check
          %p231 = pneg %p47
        $region38: #{tpu_custom_call.1} parent=35 // pred_check_branch
          %233 = sbr.rel (%p231) target = $region40
        $region39: #{tpu_custom_call.1} parent=35 // pred_region
          %234 = dma.done %s227, 2048
        $region40: #{tpu_custom_call.1} parent=35 // pred_fallthru
          _
        %s235 = sand.u32 %s34, 1
        %s236 = scalar_lea.sflag [#allocation3], %s235
        %s237 = sand.u32 %s34, 1
        %s238 = smul.addr %s237, 128
        %s239 = scalar_lea.vmem [#allocation2], %s238
        %p240 = pneg %p47
        %p241 = pneg %p44
        %p242 = scmp.lt.s32.totalorder %s26, 1
        %s243 = scalar_select %p242, %s26, 1
        %s244 = scalar_lea.vmem %s1, %s243
        %p245 = pneg %p73
        %p246 = pneg %p70
        %p247 = pneg %p94
        %p248 = pneg %p91
        %p249 = pneg %p115
        %p250 = pneg %p112
        %p251 = pneg %p141
        %p252 = pneg %p138
        %s253 = sand.u32 %s128, 1
        %s254 = scalar_lea.sflag [#allocation4], %s253
        %s255 = sand.u32 %s128, 1
        %s256 = smul.addr %s255, 4
        %s257 = scalar_lea.vmem [#allocation5], %s256
        %p258 = pneg %p167
        %p259 = pneg %p164
        %s260 = sand.u32 %s154, 1
        %s261 = scalar_lea.sflag [#allocation7], %s260
        %s262 = sand.u32 %s154, 1
        %s263 = smul.addr %s262, 4
        %s264 = scalar_lea.vmem [#allocation6], %s263
        %p265 = scmp.lt.s32.totalorder %s26, 1
        %s266 = scalar_select %p265, %s26, 1
        %s267 = scalar_lea.vmem %s1, %s266
        %v268 = vld [vmem:[%s230] sm:$0xff]
        %v269 = vld [vmem:[%s230 + $0x8] sm:$0xff]
        %v270 = vld [vmem:[%s230 + $0x10] sm:$0xff]
        %v271 = vld [vmem:[%s230 + $0x18] sm:$0xff]
        %v272 = vld [vmem:[%s230 + $0x20] sm:$0xff]
        %v273 = vld [vmem:[%s230 + $0x28] sm:$0xff]
        %v274 = vld [vmem:[%s230 + $0x30] sm:$0xff]
        %v275 = vld [vmem:[%s230 + $0x38] sm:$0xff]
        %v276 = vld [vmem:[%s230 + $0x40] sm:$0xff]
        %v277 = vld [vmem:[%s230 + $0x48] sm:$0xff]
        %v278 = vld [vmem:[%s230 + $0x50] sm:$0xff]
        %v279 = vld [vmem:[%s230 + $0x58] sm:$0xff]
        %v280 = vld [vmem:[%s230 + $0x60] sm:$0xff]
        %v281 = vld [vmem:[%s230 + $0x68] sm:$0xff]
        %v282 = vld [vmem:[%s230 + $0x70] sm:$0xff]
        %v283 = vld [vmem:[%s230 + $0x78] sm:$0xff]
        %v284 = vld [vmem:[%s2] sm:$0xff]
        %v285 = vld [vmem:[%s2 + $0x8] sm:$0xff]
        %v286 = vld [vmem:[%s2 + $0x10] sm:$0xff]
        %v287 = vld [vmem:[%s2 + $0x18] sm:$0xff]
        %v288 = vld [vmem:[%s2 + $0x20] sm:$0xff]
        %v289 = vld [vmem:[%s2 + $0x28] sm:$0xff]
        %v290 = vld [vmem:[%s2 + $0x30] sm:$0xff]
        %v291 = vld [vmem:[%s2 + $0x38] sm:$0xff]
        %v292 = vld [vmem:[%s2 + $0x40] sm:$0xff]
        %v293 = vld [vmem:[%s2 + $0x48] sm:$0xff]
        %v294 = vld [vmem:[%s2 + $0x50] sm:$0xff]
        %v295 = vld [vmem:[%s2 + $0x58] sm:$0xff]
        %v296 = vld [vmem:[%s2 + $0x60] sm:$0xff]
        %v297 = vld [vmem:[%s2 + $0x68] sm:$0xff]
        %v298 = vld [vmem:[%s2 + $0x70] sm:$0xff]
        %v299 = vld [vmem:[%s2 + $0x78] sm:$0xff]
        %300 = vmatprep.subr.mxu0 0.0
        %301 = vmatpush1.msra.mxu0 %v284
        %302 = vmatprep.subr.mxu0 0.0
        %303 = vmatpush1.msra.mxu0 %v285
        %304 = vmatprep.subr.mxu0 0.0
        %305 = vmatpush1.msra.mxu0 %v286
        %306 = vmatprep.subr.mxu0 0.0
        %307 = vmatpush1.msra.mxu0 %v287
        %308 = vmatprep.subr.mxu0 0.0
        %309 = vmatpush1.msra.mxu0 %v288
        %310 = vmatprep.subr.mxu0 0.0
        %311 = vmatpush1.msra.mxu0 %v289
        %312 = vmatprep.subr.mxu0 0.0
        %313 = vmatpush1.msra.mxu0 %v290
        %314 = vmatprep.subr.mxu0 0.0
        %315 = vmatpush1.msra.mxu0 %v291
        %316 = vmatprep.subr.mxu0 0.0
        %317 = vmatpush1.msra.mxu0 %v292
        %318 = vmatprep.subr.mxu0 0.0
        %319 = vmatpush1.msra.mxu0 %v293
        %320 = vmatprep.subr.mxu0 0.0
        %321 = vmatpush1.msra.mxu0 %v294
        %322 = vmatprep.subr.mxu0 0.0
        %323 = vmatpush1.msra.mxu0 %v295
        %324 = vmatprep.subr.mxu0 0.0
        %325 = vmatpush1.msra.mxu0 %v296
        %326 = vmatprep.subr.mxu0 0.0
        %327 = vmatpush1.msra.mxu0 %v297
        %328 = vmatprep.subr.mxu0 0.0
        %329 = vmatpush1.msra.mxu0 %v298
        %330 = vmatprep.subr.mxu0 0.0
        %331 = vmatpush1.msra.mxu0 %v299
        %332 = vmatprep.subr.mxu0 0.0
        %333 = vmatpush1.msra.mxu0 0.0
        %334 = vmatprep.subr.mxu0 0.0
        %335 = vmatpush1.msra.mxu0 0.0
        %336 = vmatprep.subr.mxu0 0.0
        %337 = vmatpush1.msra.mxu0 0.0
        %338 = vmatprep.subr.mxu0 0.0
        %339 = vmatpush1.msra.mxu0 0.0
        %340 = vmatprep.subr.mxu0 0.0
        %341 = vmatpush1.msra.mxu0 0.0
        %342 = vmatprep.subr.mxu0 0.0
        %343 = vmatpush1.msra.mxu0 0.0
        %344 = vmatprep.subr.mxu0 0.0
        %345 = vmatpush1.msra.mxu0 0.0
        %346 = vmatprep.subr.mxu0 0.0
        %347 = vmatpush1.msra.mxu0 0.0
        %348 = vmatprep.subr.mxu0 0.0
        %349 = vmatpush1.msra.mxu0 0.0
        %350 = vmatprep.subr.mxu0 0.0
        %351 = vmatpush1.msra.mxu0 0.0
        %352 = vmatprep.subr.mxu0 0.0
        %353 = vmatpush1.msra.mxu0 0.0
        %354 = vmatprep.subr.mxu0 0.0
        %355 = vmatpush1.msra.mxu0 0.0
        %356 = vmatprep.subr.mxu0 0.0
        %357 = vmatpush1.msra.mxu0 0.0
        %358 = vmatprep.subr.mxu0 0.0
        %359 = vmatpush1.msra.mxu0 0.0
        %360 = vmatprep.subr.mxu0 0.0
        %361 = vmatpush1.msra.mxu0 0.0
        %362 = vmatprep.subr.mxu0 0.0
        %363 = vmatpush1.msra.mxu0 0.0
        %364 = vmatprep.mubr.f32.mxu0 0.0
        %365 = vmatmul.mubr.f32.gmra.mrb[0].mxu0 %v268
        %v366 = vpop.f32.mrb[0].mxu0
        %v367 = vadd.f32 0.0, %v366
        %v368 = vpop.f32.mrb[0].mxu0
        %369 = vmatprep.mubr.f32.mxu0 0.0
        %370 = vmatmul.mubr.f32.gmra.mrb[0].mxu0 %v269
        %v371 = vpop.f32.mrb[0].mxu0
        %v372 = vadd.f32 0.0, %v371
        %v373 = vpop.f32.mrb[0].mxu0
        %374 = vmatprep.mubr.f32.mxu0 0.0
        %375 = vmatmul.mubr.f32.gmra.mrb[0].mxu0 %v270
        %v376 = vpop.f32.mrb[0].mxu0
        %v377 = vadd.f32 0.0, %v376
        %v378 = vpop.f32.mrb[0].mxu0
        %379 = vmatprep.mubr.f32.mxu0 0.0
        %380 = vmatmul.mubr.f32.gmra.mrb[0].mxu0 %v271
        %v381 = vpop.f32.mrb[0].mxu0
        %v382 = vadd.f32 0.0, %v381
        %v383 = vpop.f32.mrb[0].mxu0
        %384 = vmatprep.mubr.f32.mxu0 0.0
        %385 = vmatmul.mubr.f32.gmra.mrb[0].mxu0 %v272
        %v386 = vpop.f32.mrb[0].mxu0
        %v387 = vadd.f32 0.0, %v386
        %v388 = vpop.f32.mrb[0].mxu0
        %389 = vmatprep.mubr.f32.mxu0 0.0
        %390 = vmatmul.mubr.f32.gmra.mrb[0].mxu0 %v273
        %v391 = vpop.f32.mrb[0].mxu0
        %v392 = vadd.f32 0.0, %v391
        %v393 = vpop.f32.mrb[0].mxu0
        %394 = vmatprep.mubr.f32.mxu0 0.0
        %395 = vmatmul.mubr.f32.gmra.mrb[0].mxu0 %v274
        %v396 = vpop.f32.mrb[0].mxu0
        %v397 = vadd.f32 0.0, %v396
        %v398 = vpop.f32.mrb[0].mxu0
        %399 = vmatprep.mubr.f32.mxu0 0.0
        %400 = vmatmul.mubr.f32.gmra.mrb[0].mxu0 %v275
        %v401 = vpop.f32.mrb[0].mxu0
        %v402 = vadd.f32 0.0, %v401
        %v403 = vpop.f32.mrb[0].mxu0
        %404 = vmatprep.mubr.f32.mxu0 0.0
        %405 = vmatmul.mubr.f32.gmra.mrb[0].mxu0 %v276
        %v406 = vpop.f32.mrb[0].mxu0
        %v407 = vadd.f32 0.0, %v406
        %v408 = vpop.f32.mrb[0].mxu0
        %409 = vmatprep.mubr.f32.mxu0 0.0
        %410 = vmatmul.mubr.f32.gmra.mrb[0].mxu0 %v277
        %v411 = vpop.f32.mrb[0].mxu0
        %v412 = vadd.f32 0.0, %v411
        %v413 = vpop.f32.mrb[0].mxu0
        %414 = vmatprep.mubr.f32.mxu0 0.0
        %415 = vmatmul.mubr.f32.gmra.mrb[0].mxu0 %v278
        %v416 = vpop.f32.mrb[0].mxu0
        %v417 = vadd.f32 0.0, %v416
        %v418 = vpop.f32.mrb[0].mxu0
        %419 = vmatprep.mubr.f32.mxu0 0.0
        %420 = vmatmul.mubr.f32.gmra.mrb[0].mxu0 %v279
        %v421 = vpop.f32.mrb[0].mxu0
        %v422 = vadd.f32 0.0, %v421
        %v423 = vpop.f32.mrb[0].mxu0
        %424 = vmatprep.mubr.f32.mxu0 0.0
        %425 = vmatmul.mubr.f32.gmra.mrb[0].mxu0 %v280
        %v426 = vpop.f32.mrb[0].mxu0
        %v427 = vadd.f32 0.0, %v426
        %v428 = vpop.f32.mrb[0].mxu0
        %429 = vmatprep.mubr.f32.mxu0 0.0
        %430 = vmatmul.mubr.f32.gmra.mrb[0].mxu0 %v281
        %v431 = vpop.f32.mrb[0].mxu0
        %v432 = vadd.f32 0.0, %v431
        %v433 = vpop.f32.mrb[0].mxu0
        %434 = vmatprep.mubr.f32.mxu0 0.0
        %435 = vmatmul.mubr.f32.gmra.mrb[0].mxu0 %v282
        %v436 = vpop.f32.mrb[0].mxu0
        %v437 = vadd.f32 0.0, %v436
        %v438 = vpop.f32.mrb[0].mxu0
        %439 = vmatprep.mubr.f32.mxu0 0.0
        %440 = vmatmul.mubr.f32.gmra.mrb[0].mxu0 %v283
        %v441 = vpop.f32.mrb[0].mxu0
        %v442 = vadd.f32 0.0, %v441
        %v443 = vpop.f32.mrb[0].mxu0
        %444 = vdwg.mxu0
        %v445 = vtanh.pop %v367
        %v446 = vtanh.pop %v372
        %v447 = vtanh.pop %v377
        %v448 = vtanh.pop %v382
        %v449 = vtanh.pop %v387
        %v450 = vtanh.pop %v392
        %v451 = vtanh.pop %v397
        %v452 = vtanh.pop %v402
        %v453 = vtanh.pop %v407
        %v454 = vtanh.pop %v412
        %v455 = vtanh.pop %v417
        %v456 = vtanh.pop %v422
        %v457 = vtanh.pop %v427
        %v458 = vtanh.pop %v432
        %v459 = vtanh.pop %v437
        %v460 = vtanh.pop %v442
        %v461 = vld [vmem:[%s3] sm:$0xf]
        %vm462 = vcmask 130048
        %v464 = vsel %vm462, %v461, 0
        %v467 = vsel %vm462, %v445, 0
        %v470 = vsel %vm462, %v446, 0
        %v473 = vsel %vm462, %v447, 0
        %v476 = vsel %vm462, %v448, 0
        %v479 = vsel %vm462, %v449, 0
        %v482 = vsel %vm462, %v450, 0
        %v485 = vsel %vm462, %v451, 0
        %v488 = vsel %vm462, %v452, 0
        %v491 = vsel %vm462, %v453, 0
        %v494 = vsel %vm462, %v454, 0
        %v497 = vsel %vm462, %v455, 0
        %v500 = vsel %vm462, %v456, 0
        %v503 = vsel %vm462, %v457, 0
        %v506 = vsel %vm462, %v458, 0
        %v509 = vsel %vm462, %v459, 0
        %v512 = vsel %vm462, %v460, 0
        %514 = vmatprep.subr.mxu0 0.0
        %515 = vmatpush1.xpose.msra.mxu0 %v467
        %516 = vmatprep.subr.mxu0 0.0
        %517 = vmatpush1.xpose.msra.mxu0 %v470
        %518 = vmatprep.subr.mxu0 0.0
        %519 = vmatpush1.xpose.msra.mxu0 %v473
        %520 = vmatprep.subr.mxu0 0.0
        %521 = vmatpush1.xpose.msra.mxu0 %v476
        %522 = vmatprep.subr.mxu0 0.0
        %523 = vmatpush1.xpose.msra.mxu0 %v479
        %524 = vmatprep.subr.mxu0 0.0
        %525 = vmatpush1.xpose.msra.mxu0 %v482
        %526 = vmatprep.subr.mxu0 0.0
        %527 = vmatpush1.xpose.msra.mxu0 %v485
        %528 = vmatprep.subr.mxu0 0.0
        %529 = vmatpush1.xpose.msra.mxu0 %v488
        %530 = vmatprep.subr.mxu0 0.0
        %531 = vmatpush1.xpose.msra.mxu0 %v491
        %532 = vmatprep.subr.mxu0 0.0
        %533 = vmatpush1.xpose.msra.mxu0 %v494
        %534 = vmatprep.subr.mxu0 0.0
        %535 = vmatpush1.xpose.msra.mxu0 %v497
        %536 = vmatprep.subr.mxu0 0.0
        %537 = vmatpush1.xpose.msra.mxu0 %v500
        %538 = vmatprep.subr.mxu0 0.0
        %539 = vmatpush1.xpose.msra.mxu0 %v503
        %540 = vmatprep.subr.mxu0 0.0
        %541 = vmatpush1.xpose.msra.mxu0 %v506
        %542 = vmatprep.subr.mxu0 0.0
        %543 = vmatpush1.xpose.msra.mxu0 %v509
        %544 = vmatprep.subr.mxu0 0.0
        %545 = vmatpush1.xpose.msra.mxu0 %v512
        %546 = vmatprep.subr.mxu0 0.0
        %547 = vmatpush1.xpose.msra.mxu0 0.0
        %548 = vmatprep.subr.mxu0 0.0
        %549 = vmatpush1.xpose.msra.mxu0 0.0
        %550 = vmatprep.subr.mxu0 0.0
        %551 = vmatpush1.xpose.msra.mxu0 0.0
        %552 = vmatprep.subr.mxu0 0.0
        %553 = vmatpush1.xpose.msra.mxu0 0.0
        %554 = vmatprep.subr.mxu0 0.0
        %555 = vmatpush1.xpose.msra.mxu0 0.0
        %556 = vmatprep.subr.mxu0 0.0
        %557 = vmatpush1.xpose.msra.mxu0 0.0
        %558 = vmatprep.subr.mxu0 0.0
        %559 = vmatpush1.xpose.msra.mxu0 0.0
        %560 = vmatprep.subr.mxu0 0.0
        %561 = vmatpush1.xpose.msra.mxu0 0.0
        %562 = vmatprep.subr.mxu0 0.0
        %563 = vmatpush1.xpose.msra.mxu0 0.0
        %564 = vmatprep.subr.mxu0 0.0
        %565 = vmatpush1.xpose.msra.mxu0 0.0
        %566 = vmatprep.subr.mxu0 0.0
        %567 = vmatpush1.xpose.msra.mxu0 0.0
        %568 = vmatprep.subr.mxu0 0.0
        %569 = vmatpush1.xpose.msra.mxu0 0.0
        %570 = vmatprep.subr.mxu0 0.0
        %571 = vmatpush1.xpose.msra.mxu0 0.0
        %572 = vmatprep.subr.mxu0 0.0
        %573 = vmatpush1.xpose.msra.mxu0 0.0
        %574 = vmatprep.subr.mxu0 0.0
        %575 = vmatpush1.xpose.msra.mxu0 0.0
        %576 = vmatprep.subr.mxu0 0.0
        %577 = vmatpush1.xpose.msra.mxu0 0.0
        %578 = vmatprep.mubr.f32.mxu0 0.0
        %579 = vmatmul.mubr.f32.gmra.mrb[0].mxu0 %v464
        %v580 = vpop.f32.mrb[0].mxu0
        %v581 = vadd.f32 0.0, %v580
        %v582 = vpop.f32.mrb[0].mxu0
        %583 = vdwg.mxu0
        %v584 = vld [vmem:[%s267] sm:$0x1]
        %vm585 = vcmp.eq.f32.partialorder %v584, 0.0
        %v586 = vsel %vm585, 1, 0
        %v587 = vlaneseq
        %v588 = vshrl.u32 %v587, 7
        %v589 = vsub.s32 0, %v588
        %v590 = vrot.slane %v586, %v589
        %vm591 = vcmp.eq.s32.totalorder %v590, 1
        %v592 = vsel %vm591, -1e+09, %v581
        %vm593 = vcmask 1043456
        %v594 = vsel %vm593, %v592, -inf
        %595 = vmax.xlane.f32.xlu0 %v594
        %v596 = vpop.xlane.xlu0 %595
        %v597 = vsub.f32 %v592, %v596
        %v598 = vmul.f32 %v597, 1.442695
        %v599 = vpow.pop %v598
        %v600 = vsel %vm593, %v599, 0.0
        %601 = vadd.xlane.f32.xlu0 %v600
        %v602 = vpop.xlane.xlu0 %601
        %v603 = vrcp.pop %v602
        %v604 = vmul.f32 %v599, %v603
        %605 = vst [vmem:[%s264] sm:$0xf] %v604
        %v606 = vld [vmem:[%s230] sm:$0xff]
        %v607 = vld [vmem:[%s230 + $0x8] sm:$0xff]
        %v608 = vld [vmem:[%s230 + $0x10] sm:$0xff]
        %v609 = vld [vmem:[%s230 + $0x18] sm:$0xff]
        %v610 = vld [vmem:[%s230 + $0x20] sm:$0xff]
        %v611 = vld [vmem:[%s230 + $0x28] sm:$0xff]
        %v612 = vld [vmem:[%s230 + $0x30] sm:$0xff]
        %v613 = vld [vmem:[%s230 + $0x38] sm:$0xff]
        %v614 = vld [vmem:[%s230 + $0x40] sm:$0xff]
        %v615 = vld [vmem:[%s230 + $0x48] sm:$0xff]
        %v616 = vld [vmem:[%s230 + $0x50] sm:$0xff]
        %v617 = vld [vmem:[%s230 + $0x58] sm:$0xff]
        %v618 = vld [vmem:[%s230 + $0x60] sm:$0xff]
        %v619 = vld [vmem:[%s230 + $0x68] sm:$0xff]
        %v620 = vld [vmem:[%s230 + $0x70] sm:$0xff]
        %v621 = vld [vmem:[%s230 + $0x78] sm:$0xff]
        %622 = vmatprep.subr.mxu0 0.0
        %623 = vmatpush1.msra.mxu0 %v606
        %624 = vmatprep.subr.mxu0 0.0
        %625 = vmatpush1.msra.mxu0 %v607
        %626 = vmatprep.subr.mxu0 0.0
        %627 = vmatpush1.msra.mxu0 %v608
        %628 = vmatprep.subr.mxu0 0.0
        %629 = vmatpush1.msra.mxu0 %v609
        %630 = vmatprep.subr.mxu0 0.0
        %631 = vmatpush1.msra.mxu0 %v610
        %632 = vmatprep.subr.mxu0 0.0
        %633 = vmatpush1.msra.mxu0 %v611
        %634 = vmatprep.subr.mxu0 0.0
        %635 = vmatpush1.msra.mxu0 %v612
        %636 = vmatprep.subr.mxu0 0.0
        %637 = vmatpush1.msra.mxu0 %v613
        %638 = vmatprep.subr.mxu0 0.0
        %639 = vmatpush1.msra.mxu0 %v614
        %640 = vmatprep.subr.mxu0 0.0
        %641 = vmatpush1.msra.mxu0 %v615
        %642 = vmatprep.subr.mxu0 0.0
        %643 = vmatpush1.msra.mxu0 %v616
        %644 = vmatprep.subr.mxu0 0.0
        %645 = vmatpush1.msra.mxu0 %v617
        %646 = vmatprep.subr.mxu0 0.0
        %647 = vmatpush1.msra.mxu0 %v618
        %648 = vmatprep.subr.mxu0 0.0
        %649 = vmatpush1.msra.mxu0 %v619
        %650 = vmatprep.subr.mxu0 0.0
        %651 = vmatpush1.msra.mxu0 %v620
        %652 = vmatprep.subr.mxu0 0.0
        %653 = vmatpush1.msra.mxu0 %v621
        %654 = vmatprep.subr.mxu0 0.0
        %655 = vmatpush1.msra.mxu0 0.0
        %656 = vmatprep.subr.mxu0 0.0
        %657 = vmatpush1.msra.mxu0 0.0
        %658 = vmatprep.subr.mxu0 0.0
        %659 = vmatpush1.msra.mxu0 0.0
        %660 = vmatprep.subr.mxu0 0.0
        %661 = vmatpush1.msra.mxu0 0.0
        %662 = vmatprep.subr.mxu0 0.0
        %663 = vmatpush1.msra.mxu0 0.0
        %664 = vmatprep.subr.mxu0 0.0
        %665 = vmatpush1.msra.mxu0 0.0
        %666 = vmatprep.subr.mxu0 0.0
        %667 = vmatpush1.msra.mxu0 0.0
        %668 = vmatprep.subr.mxu0 0.0
        %669 = vmatpush1.msra.mxu0 0.0
        %670 = vmatprep.subr.mxu0 0.0
        %671 = vmatpush1.msra.mxu0 0.0
        %672 = vmatprep.subr.mxu0 0.0
        %673 = vmatpush1.msra.mxu0 0.0
        %674 = vmatprep.subr.mxu0 0.0
        %675 = vmatpush1.msra.mxu0 0.0
        %676 = vmatprep.subr.mxu0 0.0
        %677 = vmatpush1.msra.mxu0 0.0
        %678 = vmatprep.subr.mxu0 0.0
        %679 = vmatpush1.msra.mxu0 0.0
        %680 = vmatprep.subr.mxu0 0.0
        %681 = vmatpush1.msra.mxu0 0.0
        %682 = vmatprep.subr.mxu0 0.0
        %683 = vmatpush1.msra.mxu0 0.0
        %684 = vmatprep.subr.mxu0 0.0
        %685 = vmatpush1.msra.mxu0 0.0
        %686 = vmatprep.mubr.f32.mxu0 0.0
        %687 = vmatmul.mubr.f32.gmra.mrb[0].mxu0 %v604
        %v688 = vpop.f32.mrb[0].mxu0
        %v689 = vadd.f32 0.0, %v688
        %v690 = vpop.f32.mrb[0].mxu0
        %691 = vdwg.mxu0
        %692 = vst [vmem:[%s257] sm:$0xf] %v689
        %s693 = sand.u32 %s128, 1
        %s694 = scalar_lea.sflag [#allocation4], %s693
        %s695 = sand.u32 %s128, 1
        %s696 = smul.addr %s695, 4
        %s697 = scalar_lea.vmem [#allocation5], %s696
        %s698 = sand.u32 %s154, 1
        %s699 = scalar_lea.sflag [#allocation7], %s698
        %s700 = sand.u32 %s154, 1
        %s701 = smul.addr %s700, 4
        %s702 = scalar_lea.vmem [#allocation6], %s701
        // Predicated region
        $region41: #{tpu_custom_call.1} parent=35 // pred_check
          %p703 = pneg %p138
        $region42: #{tpu_custom_call.1} parent=35 // pred_check_branch
          %705 = sbr.rel (%p703) target = $region44
        $region43: #{tpu_custom_call.1} parent=35 // pred_region
          %s707 = ssub.s32 64, 64
          %708 = vsyncadd %s694, %s707
          %s709 = smul.addr %s26, 64
          %s710 = scalar_lea.hbm %s4, %s709
          %s712 = sshll.u32 %s697, 4
          %s713 = int_to_ptr.vmem [resolvable:$true] %s712
          %715 = dma.vmem_to_hbm [thread:$0]  %s713, 64, %s710, %s694
        $region44: #{tpu_custom_call.1} parent=35 // pred_fallthru
          _
        // Predicated region
        $region45: #{tpu_custom_call.1} parent=35 // pred_check
          %p716 = pneg %p164
        $region46: #{tpu_custom_call.1} parent=35 // pred_check_branch
          %718 = sbr.rel (%p716) target = $region48
        $region47: #{tpu_custom_call.1} parent=35 // pred_region
          %s720 = ssub.s32 64, 64
          %721 = vsyncadd %s699, %s720
          %s722 = smul.addr %s26, 64
          %s723 = scalar_lea.hbm %s5, %s722
          %s725 = sshll.u32 %s702, 4
          %s726 = int_to_ptr.vmem [resolvable:$true] %s725
          %728 = dma.vmem_to_hbm [thread:$0]  %s726, 64, %s723, %s699
        $region48: #{tpu_custom_call.1} parent=35 // pred_fallthru
          _
      $region36: #{tpu_custom_call.1} parent=5 // pred_fallthru
        _
      %p729 = scmp.le.s32.totalorder 2, %s21
      // Predicated region
      $region49: #{tpu_custom_call.1} parent=5 // pred_check
        %p730 = pneg %p729
      $region50: #{tpu_custom_call.1} parent=5 // pred_check_branch
        %732 = sbr.rel (%p730) target = $region52
      $region51: #{tpu_custom_call.1} parent=5 // pred_region
        %s733 = ssub.s32 %s21, 2
        // Predicated region
        $region53: #{tpu_custom_call.1} parent=51 // pred_check
          %p734 = pneg %p144
        $region54: #{tpu_custom_call.1} parent=51 // pred_check_branch
          %736 = sbr.rel (%p734) target = $region56
        $region55: #{tpu_custom_call.1} parent=51 // pred_region
          %s737 = sand.u32 %s129, 1
          %s738 = scalar_lea.sflag [#allocation4], %s737
          %s739 = sand.u32 %s129, 1
          %s740 = smul.addr %s739, 4
          %s741 = scalar_lea.vmem [#allocation5], %s740
          %742 = dma.done %s738, 64
        $region56: #{tpu_custom_call.1} parent=51 // pred_fallthru
          _
        // Predicated region
        $region57: #{tpu_custom_call.1} parent=51 // pred_check
          %p743 = pneg %p170
        $region58: #{tpu_custom_call.1} parent=51 // pred_check_branch
          %745 = sbr.rel (%p743) target = $region60
        $region59: #{tpu_custom_call.1} parent=51 // pred_region
          %s746 = sand.u32 %s155, 1
          %s747 = scalar_lea.sflag [#allocation7], %s746
          %s748 = sand.u32 %s155, 1
          %s749 = smul.addr %s748, 4
          %s750 = scalar_lea.vmem [#allocation6], %s749
          %751 = dma.done %s747, 64
        $region60: #{tpu_custom_call.1} parent=51 // pred_fallthru
          _
      $region52: #{tpu_custom_call.1} parent=5 // pred_fallthru
        _
    $region6: #{tpu_custom_call.1} parent=1 // loop_footer
      %s25 = sadd.s32 1, %s21
    $region7: #{tpu_custom_call.1} parent=1 // loop_footer_branch
      %20 = sbr.rel target = $region3
    $region8: #{tpu_custom_call.1} parent=1 // loop_exit
      _
    %752 = vsyncpa [#allocation3], 1
    %s753 = scalar_lea.sflag [#allocation3], 1
    %754 = vsyncpa %s753, 1
    %755 = vsyncpa [#allocation4], 1
    %s756 = scalar_lea.sflag [#allocation4], 1
    %757 = vsyncpa %s756, 1
    %758 = vsyncpa [#allocation7], 1
    %s759 = scalar_lea.sflag [#allocation7], 1
    %760 = vsyncpa %s759, 1

</llo_original>
